<compile_context>
chip_gen: v7x
topology: tpu7x:2x2x1
jax: 0.10.0
libtpu: 0.0.40
codegen_flags: <defaults>
</compile_context>

<pallas_src>
import functools

import jax
import jax.numpy as jnp
from jax.experimental import pallas as pl
from jax.experimental.pallas import tpu as pltpu

_SUBLANES = 8
_LANES = 128
_ROW_GRAIN = _SUBLANES * _LANES   # 1024 rows == one full (8,128) f32 vreg
_NUM_SPLITS = 2                   # v7x has 2 TensorCores; no-op cost on v5e/v6e


def _round_up(x, m):
    return ((x + m - 1) // m) * m


def _pg_loss_kernel(w_ref, b_ref, state_ref, act_ref, rollout_ref, out_ref,
                    acc_ref, *, n_features, n_actions, inv_scale, n_tiles,
                    tiles_per_split):
    c = pl.program_id(0)   # TensorCore split (parallel)
    i = pl.program_id(1)   # column-tile sweep (reduction, arbitrary)

    @pl.when(i == 0)
    def _init():
        acc_ref[...] = jnp.zeros_like(acc_ref)

    # The last tile of the second split can be a clamped duplicate when the
    # total tile count is odd; skip its contribution entirely.
    @pl.when(c * tiles_per_split + i < n_tiles)
    def _accumulate():
        x = state_ref[...]        # (D, 8, tc) f32 — full vregs per feature
        act = act_ref[...]        # (8, tc) int32

        # logits[a] = sum_d W[d, a] * x[d] + b[a]   (VPU broadcast-FMA, no MXU)
        logits = []
        for a in range(n_actions):
            la = x[0] * w_ref[0, a]
            for d in range(1, n_features):
                la = la + x[d] * w_ref[d, a]
            logits.append(la + b_ref[a])

        if n_actions == 2:
            # log_softmax(logits)[taken] = -softplus(logit_other - logit_taken)
            d10 = logits[1] - logits[0]
            diff = jnp.where(act == 1, -d10, d10)
            loglik = -(jnp.maximum(diff, 0.0) + jnp.log1p(jnp.exp(-jnp.abs(diff))))
        else:
            m = logits[0]
            for a in range(1, n_actions):
                m = jnp.maximum(m, logits[a])
            ssum = jnp.exp(logits[0] - m)
            for a in range(1, n_actions):
                ssum = ssum + jnp.exp(logits[a] - m)
            lse = m + jnp.log(ssum)
            taken = logits[0]
            for a in range(1, n_actions):
                taken = jnp.where(act == a, logits[a], taken)
            loglik = taken - lse

        # Elementwise, vreg-shaped accumulation — no per-step cross-lane reduce.
        # Padded rows carry rollout == 0, so they contribute nothing.
        acc_ref[...] += rollout_ref[...] * loglik

    @pl.when(i == pl.num_programs(1) - 1)
    def _finalize():
        # One cross-lane/sublane reduction per split; inv_scale = -1/(T*S)
        # folds the A_hat negation and both divisions.
        partial = jnp.sum(acc_ref[...]) * inv_scale
        out_ref[...] = jnp.reshape(partial, (1, 1, 1))


def pg_loss(policy_params, state_tensor, action_tensor, reward_tensor,
            cumulative_rollout, logliklihood_tensor,
            *, trajectory_length, simulations, block_rows=262144):
    """Pallas equivalent of PG_LOSS.forward with a linear categorical policy.

    state_tensor:        [T, S, D] float32
    action_tensor:       [T, S]    int32
    reward_tensor:       unused (signature fidelity)
    cumulative_rollout:  [T, S]    float32
    logliklihood_tensor: unused (the module zeroes & overwrites it)
    block_rows:          rows of N processed per grid step (rounded to 1024).
                         Default 262144 => ~6 MiB payload / step; lower (~128K)
                         is plenty on v5e, higher (~450K) is fine on v7x.
    """
    del reward_tensor, logliklihood_tensor  # not used by the forward math
    W, b = policy_params                    # W: [D, A], b: [A]

    T, S, D = state_tensor.shape
    A = W.shape[1]
    N = T * S

    # --- tile geometry: rows packed onto (sublane, lane) --------------------
    block_rows = _round_up(block_rows, _ROW_GRAIN)
    rows_per_tile = min(block_rows, _round_up(N, _ROW_GRAIN))
    n_pad_rows = _round_up(N, rows_per_tile)          # pad <= one tile of zeros
    pad = n_pad_rows - N
    cols = n_pad_rows // _SUBLANES                    # lane-axis length
    tc = rows_per_tile // _SUBLANES                   # lane-axis tile (mult of 128)
    n_tiles = cols // tc
    tiles_per_split = -(-n_tiles // _NUM_SPLITS)      # cdiv

    # --- host-side repack: lane+sublane dense, zero-padded tail -------------
    states_t = jnp.pad(
        state_tensor.reshape(N, D).astype(jnp.float32).T,
        ((0, 0), (0, pad))).reshape(D, _SUBLANES, cols)
    actions = jnp.pad(
        action_tensor.reshape(-1).astype(jnp.int32),
        (0, pad)).reshape(_SUBLANES, cols)
    rollout = jnp.pad(
        cumulative_rollout.reshape(-1).astype(jnp.float32),
        (0, pad)).reshape(_SUBLANES, cols)

    inv_scale = -1.0 / (float(trajectory_length) * float(simulations))
    kernel = functools.partial(_pg_loss_kernel, n_features=D, n_actions=A,
                               inv_scale=inv_scale, n_tiles=n_tiles,
                               tiles_per_split=tiles_per_split)

    def col_idx(c, i):
        # Clamp so the (possibly) extra tail tile of split 1 never indexes OOB;
        # its contribution is skipped in-kernel.
        return jnp.minimum(c * tiles_per_split + i, n_tiles - 1)

    cost = pl.CostEstimate(
        flops=N * (2 * D * A + 8),
        transcendentals=2 * N,
        bytes_accessed=(D + 2) * n_pad_rows * 4 + _NUM_SPLITS * 4)

    out = pl.pallas_call(
        kernel,
        out_shape=jax.ShapeDtypeStruct((_NUM_SPLITS, 1, 1), jnp.float32),
        grid_spec=pltpu.PrefetchScalarGridSpec(
            num_scalar_prefetch=0,
            grid=(_NUM_SPLITS, tiles_per_split),
            in_specs=[
                pl.BlockSpec(memory_space=pltpu.MemorySpace.SMEM),   # W  [D, A]
                pl.BlockSpec(memory_space=pltpu.MemorySpace.SMEM),   # b  [A]
                pl.BlockSpec((D, _SUBLANES, tc),
                             lambda c, i: (0, 0, col_idx(c, i))),    # state^T
                pl.BlockSpec((_SUBLANES, tc),
                             lambda c, i: (0, col_idx(c, i))),       # actions
                pl.BlockSpec((_SUBLANES, tc),
                             lambda c, i: (0, col_idx(c, i))),       # rollout
            ],
            out_specs=pl.BlockSpec((1, 1, 1), lambda c, i: (c, 0, 0)),
            scratch_shapes=[pltpu.VMEM((_SUBLANES, tc), jnp.float32)],
        ),
        compiler_params=pltpu.CompilerParams(
            dimension_semantics=("parallel", "arbitrary"),
            vmem_limit_bytes=32 * 1024 * 1024),
        cost_estimate=cost,
    )(W.astype(jnp.float32), b.astype(jnp.float32), states_t, actions, rollout)

    # Sum the per-TensorCore partials (already scaled; sum is linear).
    return jnp.sum(out)


def _reference(policy_params, state_tensor, action_tensor, cumulative_rollout,
               *, trajectory_length, simulations):
    W, b = policy_params
    T, S, D = state_tensor.shape
    logits = state_tensor.reshape(-1, D) @ W + b
    logp = jax.nn.log_softmax(logits, axis=-1)
    loglik = jnp.take_along_axis(
        logp, action_tensor.reshape(-1, 1), axis=-1).reshape(-1)
    a_hat = -cumulative_rollout.reshape(-1)
    return jnp.dot(a_hat, loglik) / trajectory_length / simulations


if __name__ == "__main__":
    key = jax.random.PRNGKey(0)
    k1, k2, k3, k4, k5 = jax.random.split(key, 5)

    trajectory_length = 8    # T
    simulations = 2          # S
    state_dim = 4            # cartpole observation dim
    n_actions = 2            # cartpole discrete actions

    # Deterministic "policy" parameters (linear categorical policy).
    W = jax.random.normal(k1, (state_dim, n_actions), jnp.float32) * 0.1
    b = jnp.zeros((n_actions,), jnp.float32)
    policy_params = (W, b)

    state_tensor = jax.random.normal(
        k2, (trajectory_length, simulations, state_dim), jnp.float32)
    action_tensor = jax.random.randint(
        k3, (trajectory_length, simulations), 0, n_actions, jnp.int32)
    reward_tensor = jax.random.normal(
        k4, (trajectory_length, simulations), jnp.float32)
    cumulative_rollout = jax.random.normal(
        k5, (trajectory_length, simulations), jnp.float32)
    logliklihood_tensor = jnp.zeros(
        (trajectory_length, simulations), jnp.float32)

    out = pg_loss(policy_params, state_tensor, action_tensor, reward_tensor,
                  cumulative_rollout, logliklihood_tensor,
                  trajectory_length=trajectory_length,
                  simulations=simulations)
    out = jax.block_until_ready(out)

    ref = _reference(policy_params, state_tensor, action_tensor,
                     cumulative_rollout,
                     trajectory_length=trajectory_length,
                     simulations=simulations)
    assert jnp.allclose(out, ref, atol=1e-5, rtol=1e-5), (out, ref)

    print("KERNEL_OK")
</pallas_src>

<mosaic_0001>
module attributes {stable_mosaic.version = 11 : i64} {
  func.func @_pg_loss_kernel(%arg0: i32, %arg1: i32, %arg2: memref<4x2xf32, #tpu.memory_space<smem>>, %arg3: memref<2xf32, #tpu.memory_space<smem>>, %arg4: memref<4x8x128xf32, #tpu.memory_space<vmem>>, %arg5: memref<8x128xi32, #tpu.memory_space<vmem>>, %arg6: memref<8x128xf32, #tpu.memory_space<vmem>>, %arg7: memref<1x1x1xf32, #tpu.memory_space<vmem>>, %arg8: memref<8x128xf32, #tpu.memory_space<vmem>>) attributes {dimension_semantics = [#tpu.dimension_semantics<parallel>, #tpu.dimension_semantics<arbitrary>], iteration_bounds = array<i64: 2, 1>, scalar_prefetch = 0 : i64, scratch_operands = 1 : i64, tpu.core_type = #tpu.core_type<tc>, window_params = [{transform_indices = @transform_0, window_bounds = array<i64: 4, 2>}, {transform_indices = @transform_1, window_bounds = array<i64: 2>}, {transform_indices = @transform_2, window_bounds = array<i64: 4, 8, 128>}, {transform_indices = @transform_3, window_bounds = array<i64: 8, 128>}, {transform_indices = @transform_4, window_bounds = array<i64: 8, 128>}, {transform_indices = @transform_5, window_bounds = array<i64: 1, 1, 1>}]} {
    %c0_i32 = arith.constant 0 : i32
    %0 = arith.cmpi eq, %arg1, %c0_i32 : i32
    %1 = arith.extui %0 : i1 to i32
    %c0_i32_0 = arith.constant 0 : i32
    %2 = arith.cmpi ne, %1, %c0_i32_0 : i32
    scf.if %2 {
      %cst = arith.constant 0.000000e+00 : f32
      %11 = vector.broadcast %cst : f32 to vector<8x128xf32>
      %c0 = arith.constant 0 : index
      %c0_5 = arith.constant 0 : index
      %12 = vector.load %arg8[%c0, %c0_5] : memref<8x128xf32, #tpu.memory_space<vmem>>, vector<8x128xf32>
      tpu.vector_store %arg8[%c0, %c0_5], %11 {strides = array<i32>} : memref<8x128xf32, #tpu.memory_space<vmem>>, vector<8x128xf32>,
    } else {
    }
    %c1_i32 = arith.constant 1 : i32
    %3 = arith.muli %arg0, %c1_i32 : i32
    %4 = arith.addi %3, %arg1 : i32
    %c1_i32_1 = arith.constant 1 : i32
    %5 = arith.cmpi slt, %4, %c1_i32_1 : i32
    %6 = arith.extui %5 : i1 to i32
    %c0_i32_2 = arith.constant 0 : i32
    %7 = arith.cmpi ne, %6, %c0_i32_2 : i32
    scf.if %7 {
      %c0 = arith.constant 0 : index
      %c0_5 = arith.constant 0 : index
      %c0_6 = arith.constant 0 : index
      %11 = vector.load %arg4[%c0, %c0_5, %c0_6] : memref<4x8x128xf32, #tpu.memory_space<vmem>>, vector<4x8x128xf32>
      %c0_7 = arith.constant 0 : index
      %c0_8 = arith.constant 0 : index
      %12 = vector.load %arg5[%c0_7, %c0_8] : memref<8x128xi32, #tpu.memory_space<vmem>>, vector<8x128xi32>
      %13 = vector.extract_strided_slice %11 {offsets = [0, 0, 0], sizes = [1, 8, 128], strides = [1, 1, 1]} : vector<4x8x128xf32> to vector<1x8x128xf32>
      %14 = vector.shape_cast %13 : vector<1x8x128xf32> to vector<8x128xf32>
      %c0_9 = arith.constant 0 : index
      %c0_10 = arith.constant 0 : index
      %15 = memref.load %arg2[%c0_9, %c0_10] : memref<4x2xf32, #tpu.memory_space<smem>>
      %16 = vector.broadcast %15 : f32 to vector<8x128xf32>
      %17 = arith.mulf %14, %16 : vector<8x128xf32>
      %18 = vector.extract_strided_slice %11 {offsets = [1, 0, 0], sizes = [1, 8, 128], strides = [1, 1, 1]} : vector<4x8x128xf32> to vector<1x8x128xf32>
      %19 = vector.shape_cast %18 : vector<1x8x128xf32> to vector<8x128xf32>
      %c1 = arith.constant 1 : index
      %c0_11 = arith.constant 0 : index
      %20 = memref.load %arg2[%c1, %c0_11] : memref<4x2xf32, #tpu.memory_space<smem>>
      %21 = vector.broadcast %20 : f32 to vector<8x128xf32>
      %22 = arith.mulf %19, %21 : vector<8x128xf32>
      %23 = arith.addf %17, %22 : vector<8x128xf32>
      %24 = vector.extract_strided_slice %11 {offsets = [2, 0, 0], sizes = [1, 8, 128], strides = [1, 1, 1]} : vector<4x8x128xf32> to vector<1x8x128xf32>
      %25 = vector.shape_cast %24 : vector<1x8x128xf32> to vector<8x128xf32>
      %c2 = arith.constant 2 : index
      %c0_12 = arith.constant 0 : index
      %26 = memref.load %arg2[%c2, %c0_12] : memref<4x2xf32, #tpu.memory_space<smem>>
      %27 = vector.broadcast %26 : f32 to vector<8x128xf32>
      %28 = arith.mulf %25, %27 : vector<8x128xf32>
      %29 = arith.addf %23, %28 : vector<8x128xf32>
      %30 = vector.extract_strided_slice %11 {offsets = [3, 0, 0], sizes = [1, 8, 128], strides = [1, 1, 1]} : vector<4x8x128xf32> to vector<1x8x128xf32>
      %31 = vector.shape_cast %30 : vector<1x8x128xf32> to vector<8x128xf32>
      %c3 = arith.constant 3 : index
      %c0_13 = arith.constant 0 : index
      %32 = memref.load %arg2[%c3, %c0_13] : memref<4x2xf32, #tpu.memory_space<smem>>
      %33 = vector.broadcast %32 : f32 to vector<8x128xf32>
      %34 = arith.mulf %31, %33 : vector<8x128xf32>
      %35 = arith.addf %29, %34 : vector<8x128xf32>
      %c0_14 = arith.constant 0 : index
      %36 = memref.load %arg3[%c0_14] : memref<2xf32, #tpu.memory_space<smem>>
      %37 = vector.broadcast %36 : f32 to vector<8x128xf32>
      %38 = arith.addf %35, %37 : vector<8x128xf32>
      %39 = vector.extract_strided_slice %11 {offsets = [0, 0, 0], sizes = [1, 8, 128], strides = [1, 1, 1]} : vector<4x8x128xf32> to vector<1x8x128xf32>
      %40 = vector.shape_cast %39 : vector<1x8x128xf32> to vector<8x128xf32>
      %c0_15 = arith.constant 0 : index
      %c1_16 = arith.constant 1 : index
      %41 = memref.load %arg2[%c0_15, %c1_16] : memref<4x2xf32, #tpu.memory_space<smem>>
      %42 = vector.broadcast %41 : f32 to vector<8x128xf32>
      %43 = arith.mulf %40, %42 : vector<8x128xf32>
      %44 = vector.extract_strided_slice %11 {offsets = [1, 0, 0], sizes = [1, 8, 128], strides = [1, 1, 1]} : vector<4x8x128xf32> to vector<1x8x128xf32>
      %45 = vector.shape_cast %44 : vector<1x8x128xf32> to vector<8x128xf32>
      %c1_17 = arith.constant 1 : index
      %c1_18 = arith.constant 1 : index
      %46 = memref.load %arg2[%c1_17, %c1_18] : memref<4x2xf32, #tpu.memory_space<smem>>
      %47 = vector.broadcast %46 : f32 to vector<8x128xf32>
      %48 = arith.mulf %45, %47 : vector<8x128xf32>
      %49 = arith.addf %43, %48 : vector<8x128xf32>
      %50 = vector.extract_strided_slice %11 {offsets = [2, 0, 0], sizes = [1, 8, 128], strides = [1, 1, 1]} : vector<4x8x128xf32> to vector<1x8x128xf32>
      %51 = vector.shape_cast %50 : vector<1x8x128xf32> to vector<8x128xf32>
      %c2_19 = arith.constant 2 : index
      %c1_20 = arith.constant 1 : index
      %52 = memref.load %arg2[%c2_19, %c1_20] : memref<4x2xf32, #tpu.memory_space<smem>>
      %53 = vector.broadcast %52 : f32 to vector<8x128xf32>
      %54 = arith.mulf %51, %53 : vector<8x128xf32>
      %55 = arith.addf %49, %54 : vector<8x128xf32>
      %56 = vector.extract_strided_slice %11 {offsets = [3, 0, 0], sizes = [1, 8, 128], strides = [1, 1, 1]} : vector<4x8x128xf32> to vector<1x8x128xf32>
      %57 = vector.shape_cast %56 : vector<1x8x128xf32> to vector<8x128xf32>
      %c3_21 = arith.constant 3 : index
      %c1_22 = arith.constant 1 : index
      %58 = memref.load %arg2[%c3_21, %c1_22] : memref<4x2xf32, #tpu.memory_space<smem>>
      %59 = vector.broadcast %58 : f32 to vector<8x128xf32>
      %60 = arith.mulf %57, %59 : vector<8x128xf32>
      %61 = arith.addf %55, %60 : vector<8x128xf32>
      %c1_23 = arith.constant 1 : index
      %62 = memref.load %arg3[%c1_23] : memref<2xf32, #tpu.memory_space<smem>>
      %63 = vector.broadcast %62 : f32 to vector<8x128xf32>
      %64 = arith.addf %61, %63 : vector<8x128xf32>
      %65 = arith.subf %64, %38 : vector<8x128xf32>
      %c1_i32_24 = arith.constant 1 : i32
      %66 = vector.broadcast %c1_i32_24 : i32 to vector<8x128xi32>
      %67 = arith.cmpi eq, %12, %66 : vector<8x128xi32>
      %cst = arith.constant 0.000000e+00 : f32
      %68 = vector.broadcast %cst : f32 to vector<8x128xf32>
      %69 = arith.subf %68, %65 : vector<8x128xf32>
      %70 = arith.select %67, %69, %65 : vector<8x128xi1>, vector<8x128xf32>
      %cst_25 = arith.constant 0.000000e+00 : f32
      %71 = vector.broadcast %cst_25 : f32 to vector<8x128xf32>
      %72 = arith.maximumf %70, %71 : vector<8x128xf32>
      %73 = math.absf %70 : vector<8x128xf32>
      %cst_26 = arith.constant 0.000000e+00 : f32
      %74 = vector.broadcast %cst_26 : f32 to vector<8x128xf32>
      %75 = arith.subf %74, %73 : vector<8x128xf32>
      %76 = math.exp %75 : vector<8x128xf32>
      %77 = math.log1p %76 : vector<8x128xf32>
      %78 = arith.addf %72, %77 : vector<8x128xf32>
      %cst_27 = arith.constant 0.000000e+00 : f32
      %79 = vector.broadcast %cst_27 : f32 to vector<8x128xf32>
      %80 = arith.subf %79, %78 : vector<8x128xf32>
      %c0_28 = arith.constant 0 : index
      %c0_29 = arith.constant 0 : index
      %81 = vector.load %arg8[%c0_28, %c0_29] : memref<8x128xf32, #tpu.memory_space<vmem>>, vector<8x128xf32>
      %c0_30 = arith.constant 0 : index
      %c0_31 = arith.constant 0 : index
      %82 = vector.load %arg6[%c0_30, %c0_31] : memref<8x128xf32, #tpu.memory_space<vmem>>, vector<8x128xf32>
      %83 = arith.mulf %82, %80 : vector<8x128xf32>
      %84 = arith.addf %81, %83 : vector<8x128xf32>
      %c0_32 = arith.constant 0 : index
      %c0_33 = arith.constant 0 : index
      %85 = vector.load %arg8[%c0_32, %c0_33] : memref<8x128xf32, #tpu.memory_space<vmem>>, vector<8x128xf32>
      tpu.vector_store %arg8[%c0_32, %c0_33], %84 {strides = array<i32>} : memref<8x128xf32, #tpu.memory_space<vmem>>, vector<8x128xf32>,
    } else {
    }
    %c0_i32_3 = arith.constant 0 : i32
    %8 = arith.cmpi eq, %arg1, %c0_i32_3 : i32
    %9 = arith.extui %8 : i1 to i32
    %c0_i32_4 = arith.constant 0 : i32
    %10 = arith.cmpi ne, %9, %c0_i32_4 : i32
    scf.if %10 {
      %c0 = arith.constant 0 : index
      %c0_5 = arith.constant 0 : index
      %11 = vector.load %arg8[%c0, %c0_5] : memref<8x128xf32, #tpu.memory_space<vmem>>, vector<8x128xf32>
      %12 = vector.shape_cast %11 : vector<8x128xf32> to vector<1x8x128xf32>
      %cst = arith.constant dense<0.000000e+00> : vector<1xf32>
      %13 = vector.multi_reduction <add>, %12, %cst [1, 2] : vector<1x8x128xf32> to vector<1xf32>
      %14 = vector.shape_cast %13 : vector<1xf32> to vector<1x1x1xf32>
      %15 = vector.extract %14[0, 0, 0] : f32 from vector<1x1x1xf32>
      %cst_6 = arith.constant -6.250000e-02 : f32
      %16 = arith.mulf %15, %cst_6 : f32
      %17 = vector.broadcast %16 : f32 to vector<1x1x1xf32>
      %c0_7 = arith.constant 0 : index
      %c0_8 = arith.constant 0 : index
      %c0_9 = arith.constant 0 : index
      %18 = vector.load %arg7[%c0_7, %c0_8, %c0_9] : memref<1x1x1xf32, #tpu.memory_space<vmem>>, vector<1x1x1xf32>
      tpu.vector_store %arg7[%c0_7, %c0_8, %c0_9], %17 {strides = array<i32>} : memref<1x1x1xf32, #tpu.memory_space<vmem>>, vector<1x1x1xf32>,
    } else {
    }
    return
  }
  func.func @transform_0(%arg0: i32, %arg1: i32) -> (i32, i32) {
    %c0_i32 = arith.constant 0 : i32
    %c0_i32_0 = arith.constant 0 : i32
    %c0_i32_1 = arith.constant 0 : i32
    return %c0_i32, %c0_i32_0 : i32, i32
  }
  func.func @transform_1(%arg0: i32, %arg1: i32) -> i32 {
    %c0_i32 = arith.constant 0 : i32
    %c0_i32_0 = arith.constant 0 : i32
    return %c0_i32 : i32
  }
  func.func @transform_2(%arg0: i32, %arg1: i32) -> (i32, i32, i32) {
    %c1_i32 = arith.constant 1 : i32
    %0 = arith.muli %arg0, %c1_i32 : i32
    %1 = arith.addi %0, %arg1 : i32
    %c0_i32 = arith.constant 0 : i32
    %2 = arith.minsi %1, %c0_i32 : i32
    %c0_i32_0 = arith.constant 0 : i32
    %c0_i32_1 = arith.constant 0 : i32
    %c0_i32_2 = arith.constant 0 : i32
    return %c0_i32_0, %c0_i32_1, %2 : i32, i32, i32
  }
  func.func @transform_3(%arg0: i32, %arg1: i32) -> (i32, i32) {
    %c1_i32 = arith.constant 1 : i32
    %0 = arith.muli %arg0, %c1_i32 : i32
    %1 = arith.addi %0, %arg1 : i32
    %c0_i32 = arith.constant 0 : i32
    %2 = arith.minsi %1, %c0_i32 : i32
    %c0_i32_0 = arith.constant 0 : i32
    %c0_i32_1 = arith.constant 0 : i32
    return %c0_i32_0, %2 : i32, i32
  }
  func.func @transform_4(%arg0: i32, %arg1: i32) -> (i32, i32) {
    %c1_i32 = arith.constant 1 : i32
    %0 = arith.muli %arg0, %c1_i32 : i32
    %1 = arith.addi %0, %arg1 : i32
    %c0_i32 = arith.constant 0 : i32
    %2 = arith.minsi %1, %c0_i32 : i32
    %c0_i32_0 = arith.constant 0 : i32
    %c0_i32_1 = arith.constant 0 : i32
    return %c0_i32_0, %2 : i32, i32
  }
  func.func @transform_5(%arg0: i32, %arg1: i32) -> (i32, i32, i32) {
    %c0_i32 = arith.constant 0 : i32
    %c0_i32_0 = arith.constant 0 : i32
    %c0_i32_1 = arith.constant 0 : i32
    return %arg0, %c0_i32, %c0_i32_0 : i32, i32, i32
  }
}

</mosaic_0001>

<llo_original>
// kernel: tpu_custom_call.1
$region0: #{tpu_custom_call.1}
  #allocation0 [shape = 'u32[]', space=smem, size = 0x4, offset = 0x4, fixed_abs, tag = 'smem constant byte address 0x4 - core index']
  #allocation1 [shape = 'u32[144,128]{1,0:T(1,128)}', space=vmem, size = 0x12000, scoped, tag = 'internal scratch']
  #allocation2 [shape = 'f32[8,128]{1,0:T(8,128)}', space=vmem, size = 0x1000, scoped, tag = 'scratch operand']
  %s0 = inlined_call_operand.vmem [shape: f32[4,2], index: 0, kind: input, shape index: {}]
  %s1 = inlined_call_operand.vmem [shape: f32[2], index: 1, kind: input, shape index: {}]
  %s2 = inlined_call_operand.hbm [shape: f32[4,8,128], index: 2, kind: input, shape index: {}]
  %s3 = inlined_call_operand.vmem [shape: s32[8,128], index: 3, kind: input, shape index: {}]
  %s4 = inlined_call_operand.vmem [shape: f32[8,128], index: 4, kind: input, shape index: {}]
  %s5 = inlined_call_operand.vmem [shape: f32[2,1,1], index: 5, kind: output, shape index: {}]
  %s6 = sld [smem:[#allocation0]]
  $region77: #{tpu_custom_call.1} parent=0
    _
  %s8 = ssub.s32 1, %s6
  %s9 = scalar_select 0, %s8, %s6
  $region1: #{tpu_custom_call.1} parent=0
    #allocation3 [shape = 'u8[2048]{0}', space=smem, size = 0x800, scoped, tag = 'input window, operand 0, single buffered']
    #allocation4 [shape = 's32[2]{0}', space=sflag, size = 0x8, scoped, tag = 'scoped memory for tpu_custom_call.1']
    #allocation5 [shape = 's32[2]{0}', space=sflag, size = 0x8, scoped, tag = 'scoped memory for tpu_custom_call.1']
    #allocation6 [shape = 'u8[512]{0}', space=smem, size = 0x200, scoped, tag = 'input window, operand 1, single buffered']
    #allocation7 [shape = 's32[1]{0}', space=sflag, size = 0x4, scoped, tag = 'scoped memory for tpu_custom_call.1']
    #allocation8 [shape = 'u8[32768]{0}', space=vmem, size = 0x8000, scoped, tag = 'input window, operand 2']
    %10 = vsyncpa [#allocation5], 0
    %11 = vsyncpa [#allocation7], 0
    %12 = vsyncpa [#allocation4], 0
    %s13 = scalar_lea.sflag [#allocation4], 1
    %14 = vsyncpa %s13, 0
    loop: start=0, step=1, limit=4
    $region2: #{tpu_custom_call.1} parent=1 // loop_pre_header
      _
    $region3: #{tpu_custom_call.1} parent=1 // loop_header
      %s16 = sphi 0, %s20
      %p17 = scmp.ge.s32.totalorder %s16, 4
      %s23 = sphi 0, %s35
      %s24 = sphi 0, %s31
      %s25 = sphi 0, %s23
      %s26 = sphi 0, %s24
      %s27 = sphi 0, %s25
      %s28 = sphi 0, %s26
      %s36 = sphi 0, %s36
      %s38 = sphi 0, %s36
      %s39 = sphi 0, %s38
      %s53 = sphi 0, %s39
      %s57 = sphi 0, %s57
      %s59 = sphi 0, %s57
      %s60 = sphi 0, %s59
      %s74 = sphi 0, %s60
      %s86 = sphi 0, %s88
      %s89 = sphi 0, %s86
      %s90 = sphi 0, %s89
      %s106 = sphi 0, %s90
      %s118 = sphi 0, %s120
      %s121 = sphi 0, %s118
      %s122 = sphi 0, %s121
      %s138 = sphi 0, %s122
      %s150 = sphi 0, %s152
      %s153 = sphi 0, %s150
      %s154 = sphi 0, %s153
      %s170 = sphi 0, %s154
      %s176 = sphi 0, %s178
      %s179 = sphi 0, %s176
      %s180 = sphi 0, %s179
      %s196 = sphi 0, %s180
    $region4: #{tpu_custom_call.1} parent=1 // loop_header_branch
      %19 = sbr.rel (%p17) target = $region8
    $region5: #{tpu_custom_call.1} parent=1 // loop_body
      %s21 = ssub.s32 %s16, 1
      %s22 = ssub.s32 %s16, 2
      %s29 = sadd.s32 1, %s24
      %p30 = scmp.ge.s32.totalorder %s29, 1
      %s31 = scalar_select %p30, 0, %s29
      %s32 = sadd.s32 1, %s23
      %s33 = scalar_select %p30, %s32, %s23
      %p34 = scmp.ge.s32.totalorder %s33, 2
      %s35 = scalar_select %p34, 0, %s33
      %s37 = sadd.s32 %s36, 1
      %p40 = scmp.eq.s32.totalorder %s16, 1
      %p41 = scmp.ne.s32.totalorder %s36, %s38
      %p42 = scmp.eq.s32.totalorder %s16, 0
      %p43 = por %p41, %p42
      %p44 = scmp.ne.s32.totalorder %s36, %s38
      %p45 = scmp.eq.s32.totalorder %s21, 1
      %p46 = por %p44, %p45
      %p47 = scmp.ne.s32.totalorder %s38, %s39
      %p48 = scmp.eq.s32.totalorder %s21, 0
      %p49 = por %p47, %p48
      %p50 = scmp.ne.s32.totalorder %s38, %s39
      %p51 = scmp.eq.s32.totalorder %s22, 1
      %p52 = por %p50, %p51
      %p54 = scmp.ne.s32.totalorder %s39, %s53
      %p55 = scmp.eq.s32.totalorder %s22, 0
      %p56 = por %p54, %p55
      %s58 = sadd.s32 %s57, 1
      %p61 = scmp.eq.s32.totalorder %s16, 1
      %p62 = scmp.ne.s32.totalorder %s57, %s59
      %p63 = scmp.eq.s32.totalorder %s16, 0
      %p64 = por %p62, %p63
      %p65 = scmp.ne.s32.totalorder %s57, %s59
      %p66 = scmp.eq.s32.totalorder %s21, 1
      %p67 = por %p65, %p66
      %p68 = scmp.ne.s32.totalorder %s59, %s60
      %p69 = scmp.eq.s32.totalorder %s21, 0
      %p70 = por %p68, %p69
      %p71 = scmp.ne.s32.totalorder %s59, %s60
      %p72 = scmp.eq.s32.totalorder %s22, 1
      %p73 = por %p71, %p72
      %p75 = scmp.ne.s32.totalorder %s60, %s74
      %p76 = scmp.eq.s32.totalorder %s22, 0
      %p77 = por %p75, %p76
      %s78 = sadd.s32 %s23, %s24
      %p79 = scmp.lt.s32.totalorder %s78, 0
      %s80 = scalar_select %p79, %s78, 0
      %s81 = sadd.s32 %s35, %s31
      %p82 = scmp.lt.s32.totalorder %s81, 0
      %s83 = scalar_select %p82, %s81, 0
      %s84 = ssub.s32 %s80, %s83
      %p85 = scmp.eq.s32.totalorder %s84, 0
      %s87 = sadd.s32 %s86, 1
      %s88 = scalar_select %p85, %s86, %s87
      %p91 = pneg %p85
      %p92 = scmp.eq.s32.totalorder %s16, 1
      %p93 = por %p91, %p92
      %p94 = scmp.ne.s32.totalorder %s86, %s89
      %p95 = scmp.eq.s32.totalorder %s16, 0
      %p96 = por %p94, %p95
      %p97 = scmp.ne.s32.totalorder %s86, %s89
      %p98 = scmp.eq.s32.totalorder %s21, 1
      %p99 = por %p97, %p98
      %p100 = scmp.ne.s32.totalorder %s89, %s90
      %p101 = scmp.eq.s32.totalorder %s21, 0
      %p102 = por %p100, %p101
      %p103 = scmp.ne.s32.totalorder %s89, %s90
      %p104 = scmp.eq.s32.totalorder %s22, 1
      %p105 = por %p103, %p104
      %p107 = scmp.ne.s32.totalorder %s90, %s106
      %p108 = scmp.eq.s32.totalorder %s22, 0
      %p109 = por %p107, %p108
      %s110 = sadd.s32 %s23, %s24
      %p111 = scmp.lt.s32.totalorder %s110, 0
      %s112 = scalar_select %p111, %s110, 0
      %s113 = sadd.s32 %s35, %s31
      %p114 = scmp.lt.s32.totalorder %s113, 0
      %s115 = scalar_select %p114, %s113, 0
      %s116 = ssub.s32 %s112, %s115
      %p117 = scmp.eq.s32.totalorder %s116, 0
      %s119 = sadd.s32 %s118, 1
      %s120 = scalar_select %p117, %s118, %s119
      %p123 = pneg %p117
      %p124 = scmp.eq.s32.totalorder %s16, 1
      %p125 = por %p123, %p124
      %p126 = scmp.ne.s32.totalorder %s118, %s121
      %p127 = scmp.eq.s32.totalorder %s16, 0
      %p128 = por %p126, %p127
      %p129 = scmp.ne.s32.totalorder %s118, %s121
      %p130 = scmp.eq.s32.totalorder %s21, 1
      %p131 = por %p129, %p130
      %p132 = scmp.ne.s32.totalorder %s121, %s122
      %p133 = scmp.eq.s32.totalorder %s21, 0
      %p134 = por %p132, %p133
      %p135 = scmp.ne.s32.totalorder %s121, %s122
      %p136 = scmp.eq.s32.totalorder %s22, 1
      %p137 = por %p135, %p136
      %p139 = scmp.ne.s32.totalorder %s122, %s138
      %p140 = scmp.eq.s32.totalorder %s22, 0
      %p141 = por %p139, %p140
      %s142 = sadd.s32 %s23, %s24
      %p143 = scmp.lt.s32.totalorder %s142, 0
      %s144 = scalar_select %p143, %s142, 0
      %s145 = sadd.s32 %s35, %s31
      %p146 = scmp.lt.s32.totalorder %s145, 0
      %s147 = scalar_select %p146, %s145, 0
      %s148 = ssub.s32 %s144, %s147
      %p149 = scmp.eq.s32.totalorder %s148, 0
      %s151 = sadd.s32 %s150, 1
      %s152 = scalar_select %p149, %s150, %s151
      %p155 = pneg %p149
      %p156 = scmp.eq.s32.totalorder %s16, 1
      %p157 = por %p155, %p156
      %p158 = scmp.ne.s32.totalorder %s150, %s153
      %p159 = scmp.eq.s32.totalorder %s16, 0
      %p160 = por %p158, %p159
      %p161 = scmp.ne.s32.totalorder %s150, %s153
      %p162 = scmp.eq.s32.totalorder %s21, 1
      %p163 = por %p161, %p162
      %p164 = scmp.ne.s32.totalorder %s153, %s154
      %p165 = scmp.eq.s32.totalorder %s21, 0
      %p166 = por %p164, %p165
      %p167 = scmp.ne.s32.totalorder %s153, %s154
      %p168 = scmp.eq.s32.totalorder %s22, 1
      %p169 = por %p167, %p168
      %p171 = scmp.ne.s32.totalorder %s154, %s170
      %p172 = scmp.eq.s32.totalorder %s22, 0
      %p173 = por %p171, %p172
      %s174 = ssub.s32 %s23, %s35
      %p175 = scmp.eq.s32.totalorder %s174, 0
      %s177 = sadd.s32 %s176, 1
      %s178 = scalar_select %p175, %s176, %s177
      %p181 = pneg %p175
      %p182 = scmp.eq.s32.totalorder %s16, 1
      %p183 = por %p181, %p182
      %p184 = scmp.ne.s32.totalorder %s176, %s179
      %p185 = scmp.eq.s32.totalorder %s16, 0
      %p186 = por %p184, %p185
      %p187 = scmp.ne.s32.totalorder %s176, %s179
      %p188 = scmp.eq.s32.totalorder %s21, 1
      %p189 = por %p187, %p188
      %p190 = scmp.ne.s32.totalorder %s179, %s180
      %p191 = scmp.eq.s32.totalorder %s21, 0
      %p192 = por %p190, %p191
      %p193 = scmp.ne.s32.totalorder %s179, %s180
      %p194 = scmp.eq.s32.totalorder %s22, 1
      %p195 = por %p193, %p194
      %p197 = scmp.ne.s32.totalorder %s180, %s196
      %p198 = scmp.eq.s32.totalorder %s22, 0
      %p199 = por %p197, %p198
      %p200 = scmp.le.s32.totalorder 1, %s16
      %p201 = scmp.lt.s32.totalorder %s16, 3
      %p202 = pnand %p200, %p201
      %p203 = pneg %p202
      // Predicated region
      $region9: #{tpu_custom_call.1} parent=5 // pred_check
        _
      $region10: #{tpu_custom_call.1} parent=5 // pred_check_branch
        %205 = sbr.rel (%p202) target = $region12
      $region11: #{tpu_custom_call.1} parent=5 // pred_region
        %s206 = ssub.s32 %s16, 1
        // Predicated region
        $region13: #{tpu_custom_call.1} parent=11 // pred_check
          %p207 = pneg %p49
        $region14: #{tpu_custom_call.1} parent=11 // pred_check_branch
          %209 = sbr.rel (%p207) target = $region16
        $region15: #{tpu_custom_call.1} parent=11 // pred_region
          %s211 = ssub.s32 64, 64
          %212 = vsyncadd [#allocation5], %s211
          %s214 = sshll.u32 %s0, 4
          %s215 = int_to_ptr.vmem [resolvable:$true] %s214
          %217 = dma.vmem_to_smem %s215, 64, [#allocation3], [#allocation5]
        $region16: #{tpu_custom_call.1} parent=11 // pred_fallthru
          _
        // Predicated region
        $region17: #{tpu_custom_call.1} parent=11 // pred_check
          %p218 = pneg %p70
        $region18: #{tpu_custom_call.1} parent=11 // pred_check_branch
          %220 = sbr.rel (%p218) target = $region20
        $region19: #{tpu_custom_call.1} parent=11 // pred_region
          %s222 = ssub.s32 16, 16
          %223 = vsyncadd [#allocation7], %s222
          %s225 = sshll.u32 %s1, 4
          %s226 = int_to_ptr.vmem [resolvable:$true] %s225
          %228 = dma.vmem_to_smem %s226, 16, [#allocation6], [#allocation7]
        $region20: #{tpu_custom_call.1} parent=11 // pred_fallthru
          _
      $region12: #{tpu_custom_call.1} parent=5 // pred_fallthru
        _
      %p229 = scmp.lt.s32.totalorder %s16, 2
      // Predicated region
      $region21: #{tpu_custom_call.1} parent=5 // pred_check
        %p230 = pneg %p229
      $region22: #{tpu_custom_call.1} parent=5 // pred_check_branch
        %232 = sbr.rel (%p230) target = $region24
      $region23: #{tpu_custom_call.1} parent=5 // pred_region
        // Predicated region
        $region25: #{tpu_custom_call.1} parent=23 // pred_check
          %p233 = pneg %p96
        $region26: #{tpu_custom_call.1} parent=23 // pred_check_branch
          %235 = sbr.rel (%p233) target = $region28
        $region27: #{tpu_custom_call.1} parent=23 // pred_region
          %s236 = sand.u32 %s86, 1
          %s237 = scalar_lea.sflag [#allocation4], %s236
          %s238 = sand.u32 %s86, 1
          %s239 = smul.addr %s238, 32
          %s240 = scalar_lea.vmem [#allocation8], %s239
          %s241 = sadd.s32 %s23, %s24
          %p242 = scmp.lt.s32.totalorder %s241, 0
          %s243 = scalar_select %p242, %s241, 0
          %s245 = ssub.s32 512, 512
          %246 = vsyncadd %s237, %s245
          %s247 = smul.addr %s243, 128
          %s248 = scalar_lea.hbm %s2, %s247
          %s249 = sshll.u32 %s240, 4
          %s250 = int_to_ptr.vmem [resolvable:$true] %s249
          %255 = dma.hbm_to_vmem [thread:$0]  %s248, 512, %s250, %s237, 128, 128, 8
        $region28: #{tpu_custom_call.1} parent=23 // pred_fallthru
          _
        // Predicated region
        $region29: #{tpu_custom_call.1} parent=23 // pred_check
          %p256 = pneg %p128
        $region30: #{tpu_custom_call.1} parent=23 // pred_check_branch
          %258 = sbr.rel (%p256) target = $region32
        $region31: #{tpu_custom_call.1} parent=23 // pred_region
          %s259 = sadd.s32 %s23, %s24
          %p260 = scmp.lt.s32.totalorder %s259, 0
          %s261 = scalar_select %p260, %s259, 0
          %p262 = scmp.lt.s32.totalorder %s261, 0
          %s263 = scalar_select %p262, %s261, 0
          %s264 = smul.addr %s263, 8
          %s265 = scalar_lea.vmem %s3, %s264
          %s266 = sadd.s32 %s23, %s24
          %p267 = scmp.lt.s32.totalorder %s266, 0
          %s268 = scalar_select %p267, %s266, 0
        $region32: #{tpu_custom_call.1} parent=23 // pred_fallthru
          _
        // Predicated region
        $region33: #{tpu_custom_call.1} parent=23 // pred_check
          %p269 = pneg %p160
        $region34: #{tpu_custom_call.1} parent=23 // pred_check_branch
          %271 = sbr.rel (%p269) target = $region36
        $region35: #{tpu_custom_call.1} parent=23 // pred_region
          %s272 = sadd.s32 %s23, %s24
          %p273 = scmp.lt.s32.totalorder %s272, 0
          %s274 = scalar_select %p273, %s272, 0
          %p275 = scmp.lt.s32.totalorder %s274, 0
          %s276 = scalar_select %p275, %s274, 0
          %s277 = smul.addr %s276, 8
          %s278 = scalar_lea.vmem %s4, %s277
          %s279 = sadd.s32 %s23, %s24
          %p280 = scmp.lt.s32.totalorder %s279, 0
          %s281 = scalar_select %p280, %s279, 0
        $region36: #{tpu_custom_call.1} parent=23 // pred_fallthru
          _
      $region24: #{tpu_custom_call.1} parent=5 // pred_fallthru
        _
      %p282 = scmp.le.s32.totalorder 1, %s16
      %p283 = scmp.lt.s32.totalorder %s16, 3
      %p284 = pnand %p282, %p283
      %p285 = pneg %p284
      // Predicated region
      $region37: #{tpu_custom_call.1} parent=5 // pred_check
        _
      $region38: #{tpu_custom_call.1} parent=5 // pred_check_branch
        %287 = sbr.rel (%p284) target = $region40
      $region39: #{tpu_custom_call.1} parent=5 // pred_region
        %s288 = ssub.s32 %s16, 1
        // Predicated region
        $region41: #{tpu_custom_call.1} parent=39 // pred_check
          %p289 = pneg %p49
        $region42: #{tpu_custom_call.1} parent=39 // pred_check_branch
          %291 = sbr.rel (%p289) target = $region44
        $region43: #{tpu_custom_call.1} parent=39 // pred_region
          %292 = dma.done [#allocation5], 64
        $region44: #{tpu_custom_call.1} parent=39 // pred_fallthru
          _
        // Predicated region
        $region45: #{tpu_custom_call.1} parent=39 // pred_check
          %p293 = pneg %p70
        $region46: #{tpu_custom_call.1} parent=39 // pred_check_branch
          %295 = sbr.rel (%p293) target = $region48
        $region47: #{tpu_custom_call.1} parent=39 // pred_region
          %296 = dma.done [#allocation7], 16
        $region48: #{tpu_custom_call.1} parent=39 // pred_fallthru
          _
        %s297 = sand.u32 %s89, 1
        %s298 = scalar_lea.sflag [#allocation4], %s297
        %s299 = sand.u32 %s89, 1
        %s300 = smul.addr %s299, 32
        %s301 = scalar_lea.vmem [#allocation8], %s300
        // Predicated region
        $region49: #{tpu_custom_call.1} parent=39 // pred_check
          %p302 = pneg %p102
        $region50: #{tpu_custom_call.1} parent=39 // pred_check_branch
          %304 = sbr.rel (%p302) target = $region52
        $region51: #{tpu_custom_call.1} parent=39 // pred_region
          %305 = dma.done %s298, 512
        $region52: #{tpu_custom_call.1} parent=39 // pred_fallthru
          _
        %306 = sfence
        %p307 = pneg %p49
        %p308 = pneg %p46
        %p309 = pneg %p70
        %p310 = pneg %p67
        %s311 = sand.u32 %s89, 1
        %s312 = scalar_lea.sflag [#allocation4], %s311
        %s313 = sand.u32 %s89, 1
        %s314 = smul.addr %s313, 32
        %s315 = scalar_lea.vmem [#allocation8], %s314
        %p316 = pneg %p102
        %p317 = pneg %p99
        %s318 = sadd.s32 %s25, %s26
        %p319 = scmp.lt.s32.totalorder %s318, 0
        %s320 = scalar_select %p319, %s318, 0
        %p321 = scmp.lt.s32.totalorder %s320, 0
        %s322 = scalar_select %p321, %s320, 0
        %s323 = smul.addr %s322, 8
        %s324 = scalar_lea.vmem %s3, %s323
        %p325 = pneg %p134
        %p326 = pneg %p131
        %s327 = sadd.s32 %s25, %s26
        %p328 = scmp.lt.s32.totalorder %s327, 0
        %s329 = scalar_select %p328, %s327, 0
        %p330 = scmp.lt.s32.totalorder %s329, 0
        %s331 = scalar_select %p330, %s329, 0
        %s332 = smul.addr %s331, 8
        %s333 = scalar_lea.vmem %s4, %s332
        %p334 = pneg %p166
        %p335 = pneg %p163
        %p336 = pneg %p192
        %p337 = pneg %p189
        %p338 = scmp.lt.s32.totalorder %s25, 1
        %s339 = scalar_select %p338, %s25, 1
        %s340 = scalar_lea.vmem %s5, %s339
        %s341 = sadd.s32 %s25, %s26
        %p342 = scmp.lt.s32.totalorder %s341, 0
        %s343 = scalar_select %p342, %s341, 0
        %s344 = sadd.s32 %s25, %s26
        %p345 = scmp.lt.s32.totalorder %s344, 0
        %s346 = scalar_select %p345, %s344, 0
        %p347 = scmp.lt.s32.totalorder %s346, 0
        %s348 = scalar_select %p347, %s346, 0
        %s349 = smul.addr %s348, 8
        %s350 = scalar_lea.vmem %s3, %s349
        %s351 = sadd.s32 %s25, %s26
        %p352 = scmp.lt.s32.totalorder %s351, 0
        %s353 = scalar_select %p352, %s351, 0
        %s354 = sadd.s32 %s25, %s26
        %p355 = scmp.lt.s32.totalorder %s354, 0
        %s356 = scalar_select %p355, %s354, 0
        %p357 = scmp.lt.s32.totalorder %s356, 0
        %s358 = scalar_select %p357, %s356, 0
        %s359 = smul.addr %s358, 8
        %s360 = scalar_lea.vmem %s4, %s359
        %s361 = sadd.s32 %s25, %s26
        %p362 = scmp.lt.s32.totalorder %s361, 0
        %s363 = scalar_select %p362, %s361, 0
        %p364 = scmp.lt.s32.totalorder %s25, 1
        %s365 = scalar_select %p364, %s25, 1
        %s366 = scalar_lea.vmem %s5, %s365
        %p367 = scmp.eq.s32.totalorder %s26, 0
        // Predicated region
        $region53: #{tpu_custom_call.1} parent=39 // pred_check
          %p368 = pneg %p367
        $region54: #{tpu_custom_call.1} parent=39 // pred_check_branch
          %370 = sbr.rel (%p368) target = $region56
        $region55: #{tpu_custom_call.1} parent=39 // pred_region
          %371 = vst [vmem:[#allocation2] sm:$0xff] 0.0
        $region56: #{tpu_custom_call.1} parent=39 // pred_fallthru
          _
        %s372 = sadd.s32 %s25, %s26
        %p373 = scmp.lt.s32.totalorder %s372, 1
        // Predicated region
        $region57: #{tpu_custom_call.1} parent=39 // pred_check
          %p374 = pneg %p373
        $region58: #{tpu_custom_call.1} parent=39 // pred_check_branch
          %376 = sbr.rel (%p374) target = $region60
        $region59: #{tpu_custom_call.1} parent=39 // pred_region
          %v377 = vld [vmem:[%s301] sm:$0xff]
          %v378 = vld [vmem:[%s301 + $0x8] sm:$0xff]
          %v379 = vld [vmem:[%s301 + $0x10] sm:$0xff]
          %v380 = vld [vmem:[%s301 + $0x18] sm:$0xff]
          %v381 = vld [vmem:[%s350] sm:$0xff]
          %s382 = sld [smem:[#allocation3]]
          %v383 = vstv %s382
          %v384 = vmul.f32 %v377, %v383
          %s385 = sld [smem:[#allocation3 + $0x80]]
          %v386 = vstv %s385
          %v387 = vmul.f32 %v378, %v386
          %v388 = vadd.f32 %v384, %v387
          %s389 = sld [smem:[#allocation3 + $0x100]]
          %v390 = vstv %s389
          %v391 = vmul.f32 %v379, %v390
          %v392 = vadd.f32 %v388, %v391
          %s393 = sld [smem:[#allocation3 + $0x180]]
          %v394 = vstv %s393
          %v395 = vmul.f32 %v380, %v394
          %v396 = vadd.f32 %v392, %v395
          %s397 = sld [smem:[#allocation6]]
          %v398 = vstv %s397
          %v399 = vadd.f32 %v396, %v398
          %s400 = sld [smem:[#allocation3 + $0x1]]
          %v401 = vstv %s400
          %v402 = vmul.f32 %v377, %v401
          %s403 = sld [smem:[#allocation3 + $0x81]]
          %v404 = vstv %s403
          %v405 = vmul.f32 %v378, %v404
          %v406 = vadd.f32 %v402, %v405
          %s407 = sld [smem:[#allocation3 + $0x101]]
          %v408 = vstv %s407
          %v409 = vmul.f32 %v379, %v408
          %v410 = vadd.f32 %v406, %v409
          %s411 = sld [smem:[#allocation3 + $0x181]]
          %v412 = vstv %s411
          %v413 = vmul.f32 %v380, %v412
          %v414 = vadd.f32 %v410, %v413
          %s415 = sld [smem:[#allocation6 + $0x1]]
          %v416 = vstv %s415
          %v417 = vadd.f32 %v414, %v416
          %v418 = vsub.f32 %v417, %v399
          %vm419 = vcmp.eq.s32.totalorder %v381, 1
          %v420 = vsub.f32 0.0, %v418
          %v421 = vsel %vm419, %v420, %v418
          %v422 = vmax.f32 %v421, 0.0
          %v423 = vand.u32 2147483647, %v421
          %v424 = vsub.f32 0.0, %v423
          %v425 = vmul.f32 %v424, 1.442695
          %v426 = vpow.pop %v425
          %v427 = vadd.f32 %v426, 1.0
          %v428 = vlog2.pop %v427
          %v429 = vmul.f32 %v428, 0.6931472
          %v430 = vmul.f32 -0.5, %v426
          %v431 = vadd.f32 %v430, 1.0
          %v432 = vmul.f32 %v431, %v426
          %v433 = vand.u32 2147483647, %v426
          %vm434 = vcmp.lt.f32.partialorder %v433, 0.0004427343
          %v435 = vsel %vm434, %v432, %v429
          %v436 = vadd.f32 %v422, %v435
          %v437 = vsub.f32 0.0, %v436
          %v438 = vld [vmem:[#allocation2] sm:$0xff]
          %v439 = vld [vmem:[%s360] sm:$0xff]
          %v440 = vmul.f32 %v439, %v437
          %v441 = vadd.f32 %v438, %v440
          %442 = vst [vmem:[#allocation2] sm:$0xff] %v441
        $region60: #{tpu_custom_call.1} parent=39 // pred_fallthru
          _
        // Predicated region
        $region61: #{tpu_custom_call.1} parent=39 // pred_check
          %p443 = pneg %p367
        $region62: #{tpu_custom_call.1} parent=39 // pred_check_branch
          %445 = sbr.rel (%p443) target = $region64
        $region63: #{tpu_custom_call.1} parent=39 // pred_region
          %v446 = vld [vmem:[#allocation2] sm:$0xff]
          %447 = vadd.xlane.f32.xlu0 %v446
          %v448 = vpop.xlane.xlu0 %447
          %v449 = vrot.slane %v448, 4
          %v450 = vadd.f32 %v448, %v449
          %v451 = vrot.slane %v450, 2
          %v452 = vadd.f32 %v450, %v451
          %v453 = vrot.slane %v452, 1
          %v454 = vadd.f32 %v452, %v453
          %s455 = vtos %v454
          %s456 = smul.f32 %s455, -0.0625
          %v457 = vstv %s456
          %vm458 = vcmask 0
          %459 = vst.msk [vmem:[%s366] sm:$0x1] %vm458, %v457
        $region64: #{tpu_custom_call.1} parent=39 // pred_fallthru
          _
        %p460 = scmp.lt.s32.totalorder %s25, 1
        %s461 = scalar_select %p460, %s25, 1
        %s462 = scalar_lea.vmem %s5, %s461
        // Predicated region
        $region65: #{tpu_custom_call.1} parent=39 // pred_check
          %p463 = pneg %p189
        $region66: #{tpu_custom_call.1} parent=39 // pred_check_branch
          %465 = sbr.rel (%p463) target = $region68
        $region67: #{tpu_custom_call.1} parent=39 // pred_region
          _
        $region68: #{tpu_custom_call.1} parent=39 // pred_fallthru
          _
      $region40: #{tpu_custom_call.1} parent=5 // pred_fallthru
        _
      %p466 = scmp.le.s32.totalorder 2, %s16
      // Predicated region
      $region69: #{tpu_custom_call.1} parent=5 // pred_check
        %p467 = pneg %p466
      $region70: #{tpu_custom_call.1} parent=5 // pred_check_branch
        %469 = sbr.rel (%p467) target = $region72
      $region71: #{tpu_custom_call.1} parent=5 // pred_region
        %s470 = ssub.s32 %s16, 2
        // Predicated region
        $region73: #{tpu_custom_call.1} parent=71 // pred_check
          %p471 = pneg %p195
        $region74: #{tpu_custom_call.1} parent=71 // pred_check_branch
          %473 = sbr.rel (%p471) target = $region76
        $region75: #{tpu_custom_call.1} parent=71 // pred_region
          %p474 = scmp.lt.s32.totalorder %s27, 1
          %s475 = scalar_select %p474, %s27, 1
          %s476 = scalar_lea.vmem %s5, %s475
        $region76: #{tpu_custom_call.1} parent=71 // pred_fallthru
          _
      $region72: #{tpu_custom_call.1} parent=5 // pred_fallthru
        _
    $region6: #{tpu_custom_call.1} parent=1 // loop_footer
      %s20 = sadd.s32 1, %s16
    $region7: #{tpu_custom_call.1} parent=1 // loop_footer_branch
      %15 = sbr.rel target = $region3
    $region8: #{tpu_custom_call.1} parent=1 // loop_exit
      _
    %477 = vsyncpa [#allocation4], 1
    %s478 = scalar_lea.sflag [#allocation4], 1
    %479 = vsyncpa %s478, 1
    %480 = vsyncpa [#allocation5], 1
    %s481 = scalar_lea.sflag [#allocation5], 1
    %482 = vsyncpa %s481, 1
    %483 = vsyncpa [#allocation7], 1

</llo_original>
